<compile_context>
chip_gen: v5e
topology: v5e:2x2
jax: 0.10.0
libtpu: 0.0.40
codegen_flags: <defaults>
</compile_context>

<pallas_src>
import functools

import jax
import jax.numpy as jnp
from jax import lax
from jax.experimental import pallas as pl
from jax.experimental.pallas import tpu as pltpu

KSIZE = 5
PAD = (KSIZE - 1) // 2  # 2


def spatialmap_kernel(ft_ref, w_ref, out_ref, stk_ref, *, seg_w):
    # ft_ref : VMEM (1, C, H, L)   L = NB*W lanes = NB batch segments of width seg_w
    # w_ref  : SMEM (2*KSIZE*KSIZE,)  flattened Conv2d weight, layout (in_ch, ky, kx)
    # out_ref: VMEM (1, H, L)
    # stk_ref: VMEM (H, 2L) f32 scratch (lane-stacked [max | mean] image / acc)
    C = ft_ref.shape[1]
    H = ft_ref.shape[2]
    L = ft_ref.shape[3]
    L2 = 2 * L

    # ---- ChannelPool: one pass over C (bounded unroll), running max and sum ----
    x0 = ft_ref[0, 0].astype(jnp.float32)

    def red_body(c, carry):
        m, s = carry
        x = ft_ref[0, c].astype(jnp.float32)
        return jnp.maximum(m, x), s + x

    ch_max, ch_sum = lax.fori_loop(1, C, red_body, (x0, x0),
                                   unroll=min(4, max(C - 1, 1)))

    # Stack the two pooled "channels" along LANES via the VMEM scratch:
    # lanes [0, L) = max channel, lanes [L, 2L) = mean channel.
    stk_ref[:, :L] = ch_max
    stk_ref[:, L:] = ch_sum * (1.0 / C)
    stacked = stk_ref[...]                                    # (H, 2L) f32

    # ---- Separable masks / channel-select, computed once ----
    row = lax.broadcasted_iota(jnp.int32, (H, 1), 0)
    col = lax.broadcasted_iota(jnp.int32, (1, L2), 1)
    local_col = col % seg_w                 # column index within each W-wide segment
    sel_max = (col < L).astype(jnp.float32)  # 1.0 on the max-channel half of lanes

    # dy-shifted images with row validity folded in (4 sublane rolls total).
    img_dy = []
    for ky in range(KSIZE):
        dy = ky - PAD
        if dy == 0:
            img_dy.append(stacked)
        else:
            rmask = ((row + dy >= 0) & (row + dy < H)).astype(jnp.float32)
            img_dy.append(pltpu.roll(stacked, (-dy) % H, 0) * rmask)

    # ---- 5x5 conv: Q_kx = sum_ky w[ky,kx] * img_dy[ky]; one lane roll per kx ----
    # Per-segment col mask kills lane wrap, cross-batch-segment and cross-channel-half
    # bleed, so lane stacking is exactly equivalent to zero padding.
    acc = jnp.zeros((H, L2), jnp.float32)
    for kx in range(KSIZE):
        dx = kx - PAD
        q = None
        for ky in range(KSIZE):
            w_max = w_ref[ky * KSIZE + kx]                    # weight for max channel
            w_mean = w_ref[KSIZE * KSIZE + ky * KSIZE + kx]   # weight for mean channel
            # (w_max - w_mean) is a scalar-unit subtract on SMEM values.
            w_row = w_mean + sel_max * (w_max - w_mean)       # (1, 2L)
            term = img_dy[ky] * w_row
            q = term if q is None else q + term
        if dx == 0:
            acc = acc + q
        else:
            cmask = ((local_col + dx >= 0) &
                     (local_col + dx < seg_w)).astype(jnp.float32)
            acc = acc + pltpu.roll(q, (-dx) % L2, 1) * cmask
    # TODO(synk): for large H*W, tile this tap loop over sublane row-blocks and add an
    # H-tiled grid axis with a 2-row halo (explicit DMA) to bound vreg live ranges and
    # v7x VMEM; unnecessary at the small spatial sizes this attention module sees.

    # Fold the two channel halves (slice the ref, not the value).
    stk_ref[...] = acc
    conv = stk_ref[:, :L] + stk_ref[:, L:]                    # (H, L)

    # Fused consumer: sigmoid(x + 2) + 1e-4  (BasicConv here has relu=False).
    scale = jax.nn.sigmoid(conv + 2.0) + 0.0001
    out_ref[0] = scale.astype(out_ref.dtype)


@jax.jit
def spatialmap_forward(z, ft, w):
    """Pallas equivalent of the module's forward(z, ft).

    z is accepted but unused, matching the PyTorch module's forward.
    w has PyTorch Conv2d layout (O=1, I=2, kH=5, kW=5), bias=False.
    ft may be f32 or bf16 (kernel upcasts per channel).
    """
    del z  # unused by the reference forward pass
    N, C, H, W = ft.shape

    # Pack NB batch elements side-by-side along lanes (largest divisor of N with
    # NB*W <= 128); for the tiny test case this also collapses the grid to 1 step.
    target_nb = max(1, 128 // W)
    NB = 1
    for d in range(1, N + 1):
        if N % d == 0 and d <= target_nb:
            NB = d
    G = N // NB
    L = NB * W

    ft_packed = (ft.reshape(G, NB, C, H, W)
                   .transpose(0, 2, 3, 1, 4)
                   .reshape(G, C, H, L))
    w_flat = w.reshape(-1).astype(jnp.float32)   # (2*5*5,)

    itemsize = ft.dtype.itemsize
    vmem_needed = (2 * C * H * L * itemsize      # double-buffered input block
                   + 2 * H * L * itemsize        # double-buffered output block
                   + 2 * H * L * 4               # stacked/acc scratch
                   + (4 << 20))                  # working-set headroom
    vmem_limit = int(min(64 << 20, max(vmem_needed, 8 << 20)))

    out_packed = pl.pallas_call(
        functools.partial(spatialmap_kernel, seg_w=W),
        out_shape=jax.ShapeDtypeStruct((G, H, L), ft.dtype),
        grid=(G,),
        in_specs=[
            pl.BlockSpec((1, C, H, L), lambda g: (g, 0, 0, 0)),
            pl.BlockSpec(memory_space=pltpu.MemorySpace.SMEM),
        ],
        out_specs=pl.BlockSpec((1, H, L), lambda g: (g, 0, 0)),
        scratch_shapes=[pltpu.VMEM((H, 2 * L), jnp.float32)],
        compiler_params=pltpu.CompilerParams(
            dimension_semantics=("parallel",),
            vmem_limit_bytes=vmem_limit),
    )(ft_packed, w_flat)

    # Unpack lane segments back to (N, 1, H, W).
    out = (out_packed.reshape(G, H, NB, W)
                     .transpose(0, 2, 1, 3)
                     .reshape(N, 1, H, W))
    return out


def spatialmap_reference(ft, w):
    """Plain-JAX reference for correctness checking."""
    ch_max = jnp.max(ft, axis=1, keepdims=True)
    ch_mean = jnp.mean(ft, axis=1, keepdims=True)
    x = jnp.concatenate([ch_max, ch_mean], axis=1)        # (N, 2, H, W)
    out = lax.conv_general_dilated(
        x, w, window_strides=(1, 1),
        padding=((PAD, PAD), (PAD, PAD)),
        dimension_numbers=("NCHW", "OIHW", "NCHW"))
    return jax.nn.sigmoid(out + 2.0) + 0.0001


if __name__ == "__main__":
    key = jax.random.PRNGKey(0)
    k_ft, k_z, k_w = jax.random.split(key, 3)

    N, C, H, W = 2, 4, 16, 16
    ft = jax.random.normal(k_ft, (N, C, H, W), dtype=jnp.float32)
    z = jax.random.normal(k_z, (N, C, H, W), dtype=jnp.float32)  # unused by forward

    # Deterministic Conv2d(2, 1, 5, bias=False) weight init (kaiming-uniform-like).
    fan_in = 2 * KSIZE * KSIZE
    bound = (1.0 / fan_in) ** 0.5
    w = jax.random.uniform(k_w, (1, 2, KSIZE, KSIZE), jnp.float32, -bound, bound)

    out = spatialmap_forward(z, ft, w)
    out = jax.block_until_ready(out)

    ref = spatialmap_reference(ft, w)
    assert out.shape == (N, 1, H, W), out.shape
    max_err = float(jnp.max(jnp.abs(out - ref)))
    assert jnp.allclose(out, ref, rtol=1e-3, atol=1e-4), max_err

    print("KERNEL_OK")
</pallas_src>

<mosaic_0001>
module attributes {stable_mosaic.version = 11 : i64} {
  func.func @spatialmap_kernel(%arg0: i32, %arg1: memref<1x4x16x32xf32, #tpu.memory_space<vmem>>, %arg2: memref<50xf32, #tpu.memory_space<smem>>, %arg3: memref<1x16x32xf32, #tpu.memory_space<vmem>>, %arg4: memref<16x64xf32, #tpu.memory_space<vmem>>) attributes {dimension_semantics = [#tpu.dimension_semantics<parallel>], iteration_bounds = array<i64: 1>, scalar_prefetch = 0 : i64, scratch_operands = 1 : i64, tpu.core_type = #tpu.core_type<tc>, window_params = [{transform_indices = @transform_0, window_bounds = array<i64: 1, 4, 16, 32>}, {transform_indices = @transform_1, window_bounds = array<i64: 50>}, {transform_indices = @transform_2, window_bounds = array<i64: 1, 16, 32>}]} {
    %c0 = arith.constant 0 : index
    %c0_0 = arith.constant 0 : index
    %c0_1 = arith.constant 0 : index
    %c0_2 = arith.constant 0 : index
    %0 = vector.load %arg1[%c0, %c0_0, %c0_1, %c0_2] : memref<1x4x16x32xf32, #tpu.memory_space<vmem>>, vector<1x1x16x32xf32>
    %1 = vector.shape_cast %0 : vector<1x1x16x32xf32> to vector<16x32xf32>
    %c1_i32 = arith.constant 1 : i32
    %c0_3 = arith.constant 0 : index
    %2 = arith.index_cast %c1_i32 : i32 to index
    %c0_4 = arith.constant 0 : index
    %c0_5 = arith.constant 0 : index
    %3 = vector.load %arg1[%c0_3, %2, %c0_4, %c0_5] : memref<1x4x16x32xf32, #tpu.memory_space<vmem>>, vector<1x1x16x32xf32>
    %4 = vector.shape_cast %3 : vector<1x1x16x32xf32> to vector<16x32xf32>
    %5 = arith.maximumf %1, %4 : vector<16x32xf32>
    %6 = arith.addf %1, %4 : vector<16x32xf32>
    %c2_i32 = arith.constant 2 : i32
    %c0_6 = arith.constant 0 : index
    %7 = arith.index_cast %c2_i32 : i32 to index
    %c0_7 = arith.constant 0 : index
    %c0_8 = arith.constant 0 : index
    %8 = vector.load %arg1[%c0_6, %7, %c0_7, %c0_8] : memref<1x4x16x32xf32, #tpu.memory_space<vmem>>, vector<1x1x16x32xf32>
    %9 = vector.shape_cast %8 : vector<1x1x16x32xf32> to vector<16x32xf32>
    %10 = arith.maximumf %5, %9 : vector<16x32xf32>
    %11 = arith.addf %6, %9 : vector<16x32xf32>
    %c3_i32 = arith.constant 3 : i32
    %c0_9 = arith.constant 0 : index
    %12 = arith.index_cast %c3_i32 : i32 to index
    %c0_10 = arith.constant 0 : index
    %c0_11 = arith.constant 0 : index
    %13 = vector.load %arg1[%c0_9, %12, %c0_10, %c0_11] : memref<1x4x16x32xf32, #tpu.memory_space<vmem>>, vector<1x1x16x32xf32>
    %14 = vector.shape_cast %13 : vector<1x1x16x32xf32> to vector<16x32xf32>
    %15 = arith.maximumf %10, %14 : vector<16x32xf32>
    %16 = arith.addf %11, %14 : vector<16x32xf32>
    %c3_i32_12 = arith.constant 3 : i32
    %c0_13 = arith.constant 0 : index
    %c0_14 = arith.constant 0 : index
    %17 = vector.load %arg4[%c0_13, %c0_14] : memref<16x64xf32, #tpu.memory_space<vmem>>, vector<16x32xf32>
    tpu.vector_store %arg4[%c0_13, %c0_14], %15 {strides = array<i32>} : memref<16x64xf32, #tpu.memory_space<vmem>>, vector<16x32xf32>,
    %cst = arith.constant 2.500000e-01 : f32
    %18 = vector.broadcast %cst : f32 to vector<16x32xf32>
    %19 = arith.mulf %16, %18 : vector<16x32xf32>
    %c0_15 = arith.constant 0 : index
    %c32 = arith.constant 32 : index
    %20 = vector.load %arg4[%c0_15, %c32] : memref<16x64xf32, #tpu.memory_space<vmem>>, vector<16x32xf32>
    tpu.vector_store %arg4[%c0_15, %c32], %19 {strides = array<i32>} : memref<16x64xf32, #tpu.memory_space<vmem>>, vector<16x32xf32>,
    %c0_16 = arith.constant 0 : index
    %c0_17 = arith.constant 0 : index
    %21 = vector.load %arg4[%c0_16, %c0_17] : memref<16x64xf32, #tpu.memory_space<vmem>>, vector<16x64xf32>
    %22 = tpu.iota {dimensions = array<i32: 0>} : vector<16x1xi32>
    %23 = tpu.iota {dimensions = array<i32: 1>} : vector<1x64xi32>
    %c16_i32 = arith.constant 16 : i32
    %c0_i32 = arith.constant 0 : i32
    %24 = arith.cmpi eq, %c16_i32, %c0_i32 : i32
    %c1_i32_18 = arith.constant 1 : i32
    %25 = arith.select %24, %c1_i32_18, %c16_i32 : i32
    %26 = vector.broadcast %25 : i32 to vector<1x64xi32>
    %27 = arith.remsi %23, %26 : vector<1x64xi32>
    %c0_i32_19 = arith.constant 0 : i32
    %28 = vector.broadcast %c0_i32_19 : i32 to vector<1x64xi32>
    %29 = arith.cmpi ne, %27, %28 : vector<1x64xi32>
    %c0_i32_20 = arith.constant 0 : i32
    %30 = vector.broadcast %c0_i32_20 : i32 to vector<1x64xi32>
    %31 = arith.cmpi slt, %27, %30 : vector<1x64xi32>
    %c0_i32_21 = arith.constant 0 : i32
    %32 = arith.cmpi slt, %25, %c0_i32_21 : i32
    %33 = vector.broadcast %32 : i1 to vector<1x64xi1>
    %34 = vector.broadcast %33 : vector<1x64xi1> to vector<1x64xi1>
    %35 = arith.xori %31, %34 : vector<1x64xi1>
    %36 = arith.andi %35, %29 : vector<1x64xi1>
    %37 = vector.broadcast %25 : i32 to vector<1x64xi32>
    %38 = arith.addi %27, %37 : vector<1x64xi32>
    %39 = arith.select %36, %38, %27 : vector<1x64xi1>, vector<1x64xi32>
    %c32_i32 = arith.constant 32 : i32
    %40 = vector.broadcast %c32_i32 : i32 to vector<1x64xi32>
    %41 = arith.cmpi slt, %23, %40 : vector<1x64xi32>
    %42 = arith.extui %41 : vector<1x64xi1> to vector<1x64xi32>
    %43 = arith.sitofp %42 : vector<1x64xi32> to vector<1x64xf32>
    %c-2_i32 = arith.constant -2 : i32
    %44 = vector.broadcast %c-2_i32 : i32 to vector<16x1xi32>
    %45 = arith.addi %22, %44 : vector<16x1xi32>
    %c0_i32_22 = arith.constant 0 : i32
    %46 = vector.broadcast %c0_i32_22 : i32 to vector<16x1xi32>
    %47 = arith.cmpi sge, %45, %46 : vector<16x1xi32>
    %c-2_i32_23 = arith.constant -2 : i32
    %48 = vector.broadcast %c-2_i32_23 : i32 to vector<16x1xi32>
    %49 = arith.addi %22, %48 : vector<16x1xi32>
    %c16_i32_24 = arith.constant 16 : i32
    %50 = vector.broadcast %c16_i32_24 : i32 to vector<16x1xi32>
    %51 = arith.cmpi slt, %49, %50 : vector<16x1xi32>
    %52 = arith.andi %47, %51 : vector<16x1xi1>
    %53 = arith.extui %52 : vector<16x1xi1> to vector<16x1xi32>
    %54 = arith.sitofp %53 : vector<16x1xi32> to vector<16x1xf32>
    %c2_i32_25 = arith.constant 2 : i32
    %55 = tpu.dynamic_rotate %21 by %c2_i32_25 dim 0 : vector<16x64xf32>, i32 -> vector<16x64xf32>
    %56 = vector.broadcast %54 : vector<16x1xf32> to vector<16x64xf32>
    %57 = arith.mulf %55, %56 : vector<16x64xf32>
    %c-1_i32 = arith.constant -1 : i32
    %58 = vector.broadcast %c-1_i32 : i32 to vector<16x1xi32>
    %59 = arith.addi %22, %58 : vector<16x1xi32>
    %c0_i32_26 = arith.constant 0 : i32
    %60 = vector.broadcast %c0_i32_26 : i32 to vector<16x1xi32>
    %61 = arith.cmpi sge, %59, %60 : vector<16x1xi32>
    %c-1_i32_27 = arith.constant -1 : i32
    %62 = vector.broadcast %c-1_i32_27 : i32 to vector<16x1xi32>
    %63 = arith.addi %22, %62 : vector<16x1xi32>
    %c16_i32_28 = arith.constant 16 : i32
    %64 = vector.broadcast %c16_i32_28 : i32 to vector<16x1xi32>
    %65 = arith.cmpi slt, %63, %64 : vector<16x1xi32>
    %66 = arith.andi %61, %65 : vector<16x1xi1>
    %67 = arith.extui %66 : vector<16x1xi1> to vector<16x1xi32>
    %68 = arith.sitofp %67 : vector<16x1xi32> to vector<16x1xf32>
    %c1_i32_29 = arith.constant 1 : i32
    %69 = tpu.dynamic_rotate %21 by %c1_i32_29 dim 0 : vector<16x64xf32>, i32 -> vector<16x64xf32>
    %70 = vector.broadcast %68 : vector<16x1xf32> to vector<16x64xf32>
    %71 = arith.mulf %69, %70 : vector<16x64xf32>
    %c1_i32_30 = arith.constant 1 : i32
    %72 = vector.broadcast %c1_i32_30 : i32 to vector<16x1xi32>
    %73 = arith.addi %22, %72 : vector<16x1xi32>
    %c0_i32_31 = arith.constant 0 : i32
    %74 = vector.broadcast %c0_i32_31 : i32 to vector<16x1xi32>
    %75 = arith.cmpi sge, %73, %74 : vector<16x1xi32>
    %c1_i32_32 = arith.constant 1 : i32
    %76 = vector.broadcast %c1_i32_32 : i32 to vector<16x1xi32>
    %77 = arith.addi %22, %76 : vector<16x1xi32>
    %c16_i32_33 = arith.constant 16 : i32
    %78 = vector.broadcast %c16_i32_33 : i32 to vector<16x1xi32>
    %79 = arith.cmpi slt, %77, %78 : vector<16x1xi32>
    %80 = arith.andi %75, %79 : vector<16x1xi1>
    %81 = arith.extui %80 : vector<16x1xi1> to vector<16x1xi32>
    %82 = arith.sitofp %81 : vector<16x1xi32> to vector<16x1xf32>
    %c15_i32 = arith.constant 15 : i32
    %83 = tpu.dynamic_rotate %21 by %c15_i32 dim 0 : vector<16x64xf32>, i32 -> vector<16x64xf32>
    %84 = vector.broadcast %82 : vector<16x1xf32> to vector<16x64xf32>
    %85 = arith.mulf %83, %84 : vector<16x64xf32>
    %c2_i32_34 = arith.constant 2 : i32
    %86 = vector.broadcast %c2_i32_34 : i32 to vector<16x1xi32>
    %87 = arith.addi %22, %86 : vector<16x1xi32>
    %c0_i32_35 = arith.constant 0 : i32
    %88 = vector.broadcast %c0_i32_35 : i32 to vector<16x1xi32>
    %89 = arith.cmpi sge, %87, %88 : vector<16x1xi32>
    %c2_i32_36 = arith.constant 2 : i32
    %90 = vector.broadcast %c2_i32_36 : i32 to vector<16x1xi32>
    %91 = arith.addi %22, %90 : vector<16x1xi32>
    %c16_i32_37 = arith.constant 16 : i32
    %92 = vector.broadcast %c16_i32_37 : i32 to vector<16x1xi32>
    %93 = arith.cmpi slt, %91, %92 : vector<16x1xi32>
    %94 = arith.andi %89, %93 : vector<16x1xi1>
    %95 = arith.extui %94 : vector<16x1xi1> to vector<16x1xi32>
    %96 = arith.sitofp %95 : vector<16x1xi32> to vector<16x1xf32>
    %c14_i32 = arith.constant 14 : i32
    %97 = tpu.dynamic_rotate %21 by %c14_i32 dim 0 : vector<16x64xf32>, i32 -> vector<16x64xf32>
    %98 = vector.broadcast %96 : vector<16x1xf32> to vector<16x64xf32>
    %99 = arith.mulf %97, %98 : vector<16x64xf32>
    %cst_38 = arith.constant 0.000000e+00 : f32
    %100 = vector.broadcast %cst_38 : f32 to vector<16x64xf32>
    %c0_39 = arith.constant 0 : index
    %101 = memref.load %arg2[%c0_39] : memref<50xf32, #tpu.memory_space<smem>>
    %c25 = arith.constant 25 : index
    %102 = memref.load %arg2[%c25] : memref<50xf32, #tpu.memory_space<smem>>
    %103 = arith.subf %101, %102 : f32
    %104 = vector.broadcast %103 : f32 to vector<1x64xf32>
    %105 = arith.mulf %43, %104 : vector<1x64xf32>
    %106 = vector.broadcast %102 : f32 to vector<1x64xf32>
    %107 = arith.addf %106, %105 : vector<1x64xf32>
    %108 = vector.broadcast %107 : vector<1x64xf32> to vector<16x64xf32>
    %109 = arith.mulf %57, %108 : vector<16x64xf32>
    %c5 = arith.constant 5 : index
    %110 = memref.load %arg2[%c5] : memref<50xf32, #tpu.memory_space<smem>>
    %c30 = arith.constant 30 : index
    %111 = memref.load %arg2[%c30] : memref<50xf32, #tpu.memory_space<smem>>
    %112 = arith.subf %110, %111 : f32
    %113 = vector.broadcast %112 : f32 to vector<1x64xf32>
    %114 = arith.mulf %43, %113 : vector<1x64xf32>
    %115 = vector.broadcast %111 : f32 to vector<1x64xf32>
    %116 = arith.addf %115, %114 : vector<1x64xf32>
    %117 = vector.broadcast %116 : vector<1x64xf32> to vector<16x64xf32>
    %118 = arith.mulf %71, %117 : vector<16x64xf32>
    %119 = arith.addf %109, %118 : vector<16x64xf32>
    %c10 = arith.constant 10 : index
    %120 = memref.load %arg2[%c10] : memref<50xf32, #tpu.memory_space<smem>>
    %c35 = arith.constant 35 : index
    %121 = memref.load %arg2[%c35] : memref<50xf32, #tpu.memory_space<smem>>
    %122 = arith.subf %120, %121 : f32
    %123 = vector.broadcast %122 : f32 to vector<1x64xf32>
    %124 = arith.mulf %43, %123 : vector<1x64xf32>
    %125 = vector.broadcast %121 : f32 to vector<1x64xf32>
    %126 = arith.addf %125, %124 : vector<1x64xf32>
    %127 = vector.broadcast %126 : vector<1x64xf32> to vector<16x64xf32>
    %128 = arith.mulf %21, %127 : vector<16x64xf32>
    %129 = arith.addf %119, %128 : vector<16x64xf32>
    %c15 = arith.constant 15 : index
    %130 = memref.load %arg2[%c15] : memref<50xf32, #tpu.memory_space<smem>>
    %c40 = arith.constant 40 : index
    %131 = memref.load %arg2[%c40] : memref<50xf32, #tpu.memory_space<smem>>
    %132 = arith.subf %130, %131 : f32
    %133 = vector.broadcast %132 : f32 to vector<1x64xf32>
    %134 = arith.mulf %43, %133 : vector<1x64xf32>
    %135 = vector.broadcast %131 : f32 to vector<1x64xf32>
    %136 = arith.addf %135, %134 : vector<1x64xf32>
    %137 = vector.broadcast %136 : vector<1x64xf32> to vector<16x64xf32>
    %138 = arith.mulf %85, %137 : vector<16x64xf32>
    %139 = arith.addf %129, %138 : vector<16x64xf32>
    %c20 = arith.constant 20 : index
    %140 = memref.load %arg2[%c20] : memref<50xf32, #tpu.memory_space<smem>>
    %c45 = arith.constant 45 : index
    %141 = memref.load %arg2[%c45] : memref<50xf32, #tpu.memory_space<smem>>
    %142 = arith.subf %140, %141 : f32
    %143 = vector.broadcast %142 : f32 to vector<1x64xf32>
    %144 = arith.mulf %43, %143 : vector<1x64xf32>
    %145 = vector.broadcast %141 : f32 to vector<1x64xf32>
    %146 = arith.addf %145, %144 : vector<1x64xf32>
    %147 = vector.broadcast %146 : vector<1x64xf32> to vector<16x64xf32>
    %148 = arith.mulf %99, %147 : vector<16x64xf32>
    %149 = arith.addf %139, %148 : vector<16x64xf32>
    %c-2_i32_40 = arith.constant -2 : i32
    %150 = vector.broadcast %c-2_i32_40 : i32 to vector<1x64xi32>
    %151 = arith.addi %39, %150 : vector<1x64xi32>
    %c0_i32_41 = arith.constant 0 : i32
    %152 = vector.broadcast %c0_i32_41 : i32 to vector<1x64xi32>
    %153 = arith.cmpi sge, %151, %152 : vector<1x64xi32>
    %c-2_i32_42 = arith.constant -2 : i32
    %154 = vector.broadcast %c-2_i32_42 : i32 to vector<1x64xi32>
    %155 = arith.addi %39, %154 : vector<1x64xi32>
    %c16_i32_43 = arith.constant 16 : i32
    %156 = vector.broadcast %c16_i32_43 : i32 to vector<1x64xi32>
    %157 = arith.cmpi slt, %155, %156 : vector<1x64xi32>
    %158 = arith.andi %153, %157 : vector<1x64xi1>
    %159 = arith.extui %158 : vector<1x64xi1> to vector<1x64xi32>
    %160 = arith.sitofp %159 : vector<1x64xi32> to vector<1x64xf32>
    %c2_i32_44 = arith.constant 2 : i32
    %161 = tpu.dynamic_rotate %149 by %c2_i32_44 dim 1 : vector<16x64xf32>, i32 -> vector<16x64xf32>
    %162 = vector.broadcast %160 : vector<1x64xf32> to vector<16x64xf32>
    %163 = arith.mulf %161, %162 : vector<16x64xf32>
    %164 = arith.addf %100, %163 : vector<16x64xf32>
    %c1 = arith.constant 1 : index
    %165 = memref.load %arg2[%c1] : memref<50xf32, #tpu.memory_space<smem>>
    %c26 = arith.constant 26 : index
    %166 = memref.load %arg2[%c26] : memref<50xf32, #tpu.memory_space<smem>>
    %167 = arith.subf %165, %166 : f32
    %168 = vector.broadcast %167 : f32 to vector<1x64xf32>
    %169 = arith.mulf %43, %168 : vector<1x64xf32>
    %170 = vector.broadcast %166 : f32 to vector<1x64xf32>
    %171 = arith.addf %170, %169 : vector<1x64xf32>
    %172 = vector.broadcast %171 : vector<1x64xf32> to vector<16x64xf32>
    %173 = arith.mulf %57, %172 : vector<16x64xf32>
    %c6 = arith.constant 6 : index
    %174 = memref.load %arg2[%c6] : memref<50xf32, #tpu.memory_space<smem>>
    %c31 = arith.constant 31 : index
    %175 = memref.load %arg2[%c31] : memref<50xf32, #tpu.memory_space<smem>>
    %176 = arith.subf %174, %175 : f32
    %177 = vector.broadcast %176 : f32 to vector<1x64xf32>
    %178 = arith.mulf %43, %177 : vector<1x64xf32>
    %179 = vector.broadcast %175 : f32 to vector<1x64xf32>
    %180 = arith.addf %179, %178 : vector<1x64xf32>
    %181 = vector.broadcast %180 : vector<1x64xf32> to vector<16x64xf32>
    %182 = arith.mulf %71, %181 : vector<16x64xf32>
    %183 = arith.addf %173, %182 : vector<16x64xf32>
    %c11 = arith.constant 11 : index
    %184 = memref.load %arg2[%c11] : memref<50xf32, #tpu.memory_space<smem>>
    %c36 = arith.constant 36 : index
    %185 = memref.load %arg2[%c36] : memref<50xf32, #tpu.memory_space<smem>>
    %186 = arith.subf %184, %185 : f32
    %187 = vector.broadcast %186 : f32 to vector<1x64xf32>
    %188 = arith.mulf %43, %187 : vector<1x64xf32>
    %189 = vector.broadcast %185 : f32 to vector<1x64xf32>
    %190 = arith.addf %189, %188 : vector<1x64xf32>
    %191 = vector.broadcast %190 : vector<1x64xf32> to vector<16x64xf32>
    %192 = arith.mulf %21, %191 : vector<16x64xf32>
    %193 = arith.addf %183, %192 : vector<16x64xf32>
    %c16 = arith.constant 16 : index
    %194 = memref.load %arg2[%c16] : memref<50xf32, #tpu.memory_space<smem>>
    %c41 = arith.constant 41 : index
    %195 = memref.load %arg2[%c41] : memref<50xf32, #tpu.memory_space<smem>>
    %196 = arith.subf %194, %195 : f32
    %197 = vector.broadcast %196 : f32 to vector<1x64xf32>
    %198 = arith.mulf %43, %197 : vector<1x64xf32>
    %199 = vector.broadcast %195 : f32 to vector<1x64xf32>
    %200 = arith.addf %199, %198 : vector<1x64xf32>
    %201 = vector.broadcast %200 : vector<1x64xf32> to vector<16x64xf32>
    %202 = arith.mulf %85, %201 : vector<16x64xf32>
    %203 = arith.addf %193, %202 : vector<16x64xf32>
    %c21 = arith.constant 21 : index
    %204 = memref.load %arg2[%c21] : memref<50xf32, #tpu.memory_space<smem>>
    %c46 = arith.constant 46 : index
    %205 = memref.load %arg2[%c46] : memref<50xf32, #tpu.memory_space<smem>>
    %206 = arith.subf %204, %205 : f32
    %207 = vector.broadcast %206 : f32 to vector<1x64xf32>
    %208 = arith.mulf %43, %207 : vector<1x64xf32>
    %209 = vector.broadcast %205 : f32 to vector<1x64xf32>
    %210 = arith.addf %209, %208 : vector<1x64xf32>
    %211 = vector.broadcast %210 : vector<1x64xf32> to vector<16x64xf32>
    %212 = arith.mulf %99, %211 : vector<16x64xf32>
    %213 = arith.addf %203, %212 : vector<16x64xf32>
    %c-1_i32_45 = arith.constant -1 : i32
    %214 = vector.broadcast %c-1_i32_45 : i32 to vector<1x64xi32>
    %215 = arith.addi %39, %214 : vector<1x64xi32>
    %c0_i32_46 = arith.constant 0 : i32
    %216 = vector.broadcast %c0_i32_46 : i32 to vector<1x64xi32>
    %217 = arith.cmpi sge, %215, %216 : vector<1x64xi32>
    %c-1_i32_47 = arith.constant -1 : i32
    %218 = vector.broadcast %c-1_i32_47 : i32 to vector<1x64xi32>
    %219 = arith.addi %39, %218 : vector<1x64xi32>
    %c16_i32_48 = arith.constant 16 : i32
    %220 = vector.broadcast %c16_i32_48 : i32 to vector<1x64xi32>
    %221 = arith.cmpi slt, %219, %220 : vector<1x64xi32>
    %222 = arith.andi %217, %221 : vector<1x64xi1>
    %223 = arith.extui %222 : vector<1x64xi1> to vector<1x64xi32>
    %224 = arith.sitofp %223 : vector<1x64xi32> to vector<1x64xf32>
    %c1_i32_49 = arith.constant 1 : i32
    %225 = tpu.dynamic_rotate %213 by %c1_i32_49 dim 1 : vector<16x64xf32>, i32 -> vector<16x64xf32>
    %226 = vector.broadcast %224 : vector<1x64xf32> to vector<16x64xf32>
    %227 = arith.mulf %225, %226 : vector<16x64xf32>
    %228 = arith.addf %164, %227 : vector<16x64xf32>
    %c2 = arith.constant 2 : index
    %229 = memref.load %arg2[%c2] : memref<50xf32, #tpu.memory_space<smem>>
    %c27 = arith.constant 27 : index
    %230 = memref.load %arg2[%c27] : memref<50xf32, #tpu.memory_space<smem>>
    %231 = arith.subf %229, %230 : f32
    %232 = vector.broadcast %231 : f32 to vector<1x64xf32>
    %233 = arith.mulf %43, %232 : vector<1x64xf32>
    %234 = vector.broadcast %230 : f32 to vector<1x64xf32>
    %235 = arith.addf %234, %233 : vector<1x64xf32>
    %236 = vector.broadcast %235 : vector<1x64xf32> to vector<16x64xf32>
    %237 = arith.mulf %57, %236 : vector<16x64xf32>
    %c7 = arith.constant 7 : index
    %238 = memref.load %arg2[%c7] : memref<50xf32, #tpu.memory_space<smem>>
    %c32_50 = arith.constant 32 : index
    %239 = memref.load %arg2[%c32_50] : memref<50xf32, #tpu.memory_space<smem>>
    %240 = arith.subf %238, %239 : f32
    %241 = vector.broadcast %240 : f32 to vector<1x64xf32>
    %242 = arith.mulf %43, %241 : vector<1x64xf32>
    %243 = vector.broadcast %239 : f32 to vector<1x64xf32>
    %244 = arith.addf %243, %242 : vector<1x64xf32>
    %245 = vector.broadcast %244 : vector<1x64xf32> to vector<16x64xf32>
    %246 = arith.mulf %71, %245 : vector<16x64xf32>
    %247 = arith.addf %237, %246 : vector<16x64xf32>
    %c12 = arith.constant 12 : index
    %248 = memref.load %arg2[%c12] : memref<50xf32, #tpu.memory_space<smem>>
    %c37 = arith.constant 37 : index
    %249 = memref.load %arg2[%c37] : memref<50xf32, #tpu.memory_space<smem>>
    %250 = arith.subf %248, %249 : f32
    %251 = vector.broadcast %250 : f32 to vector<1x64xf32>
    %252 = arith.mulf %43, %251 : vector<1x64xf32>
    %253 = vector.broadcast %249 : f32 to vector<1x64xf32>
    %254 = arith.addf %253, %252 : vector<1x64xf32>
    %255 = vector.broadcast %254 : vector<1x64xf32> to vector<16x64xf32>
    %256 = arith.mulf %21, %255 : vector<16x64xf32>
    %257 = arith.addf %247, %256 : vector<16x64xf32>
    %c17 = arith.constant 17 : index
    %258 = memref.load %arg2[%c17] : memref<50xf32, #tpu.memory_space<smem>>
    %c42 = arith.constant 42 : index
    %259 = memref.load %arg2[%c42] : memref<50xf32, #tpu.memory_space<smem>>
    %260 = arith.subf %258, %259 : f32
    %261 = vector.broadcast %260 : f32 to vector<1x64xf32>
    %262 = arith.mulf %43, %261 : vector<1x64xf32>
    %263 = vector.broadcast %259 : f32 to vector<1x64xf32>
    %264 = arith.addf %263, %262 : vector<1x64xf32>
    %265 = vector.broadcast %264 : vector<1x64xf32> to vector<16x64xf32>
    %266 = arith.mulf %85, %265 : vector<16x64xf32>
    %267 = arith.addf %257, %266 : vector<16x64xf32>
    %c22 = arith.constant 22 : index
    %268 = memref.load %arg2[%c22] : memref<50xf32, #tpu.memory_space<smem>>
    %c47 = arith.constant 47 : index
    %269 = memref.load %arg2[%c47] : memref<50xf32, #tpu.memory_space<smem>>
    %270 = arith.subf %268, %269 : f32
    %271 = vector.broadcast %270 : f32 to vector<1x64xf32>
    %272 = arith.mulf %43, %271 : vector<1x64xf32>
    %273 = vector.broadcast %269 : f32 to vector<1x64xf32>
    %274 = arith.addf %273, %272 : vector<1x64xf32>
    %275 = vector.broadcast %274 : vector<1x64xf32> to vector<16x64xf32>
    %276 = arith.mulf %99, %275 : vector<16x64xf32>
    %277 = arith.addf %267, %276 : vector<16x64xf32>
    %278 = arith.addf %228, %277 : vector<16x64xf32>
    %c3 = arith.constant 3 : index
    %279 = memref.load %arg2[%c3] : memref<50xf32, #tpu.memory_space<smem>>
    %c28 = arith.constant 28 : index
    %280 = memref.load %arg2[%c28] : memref<50xf32, #tpu.memory_space<smem>>
    %281 = arith.subf %279, %280 : f32
    %282 = vector.broadcast %281 : f32 to vector<1x64xf32>
    %283 = arith.mulf %43, %282 : vector<1x64xf32>
    %284 = vector.broadcast %280 : f32 to vector<1x64xf32>
    %285 = arith.addf %284, %283 : vector<1x64xf32>
    %286 = vector.broadcast %285 : vector<1x64xf32> to vector<16x64xf32>
    %287 = arith.mulf %57, %286 : vector<16x64xf32>
    %c8 = arith.constant 8 : index
    %288 = memref.load %arg2[%c8] : memref<50xf32, #tpu.memory_space<smem>>
    %c33 = arith.constant 33 : index
    %289 = memref.load %arg2[%c33] : memref<50xf32, #tpu.memory_space<smem>>
    %290 = arith.subf %288, %289 : f32
    %291 = vector.broadcast %290 : f32 to vector<1x64xf32>
    %292 = arith.mulf %43, %291 : vector<1x64xf32>
    %293 = vector.broadcast %289 : f32 to vector<1x64xf32>
    %294 = arith.addf %293, %292 : vector<1x64xf32>
    %295 = vector.broadcast %294 : vector<1x64xf32> to vector<16x64xf32>
    %296 = arith.mulf %71, %295 : vector<16x64xf32>
    %297 = arith.addf %287, %296 : vector<16x64xf32>
    %c13 = arith.constant 13 : index
    %298 = memref.load %arg2[%c13] : memref<50xf32, #tpu.memory_space<smem>>
    %c38 = arith.constant 38 : index
    %299 = memref.load %arg2[%c38] : memref<50xf32, #tpu.memory_space<smem>>
    %300 = arith.subf %298, %299 : f32
    %301 = vector.broadcast %300 : f32 to vector<1x64xf32>
    %302 = arith.mulf %43, %301 : vector<1x64xf32>
    %303 = vector.broadcast %299 : f32 to vector<1x64xf32>
    %304 = arith.addf %303, %302 : vector<1x64xf32>
    %305 = vector.broadcast %304 : vector<1x64xf32> to vector<16x64xf32>
    %306 = arith.mulf %21, %305 : vector<16x64xf32>
    %307 = arith.addf %297, %306 : vector<16x64xf32>
    %c18 = arith.constant 18 : index
    %308 = memref.load %arg2[%c18] : memref<50xf32, #tpu.memory_space<smem>>
    %c43 = arith.constant 43 : index
    %309 = memref.load %arg2[%c43] : memref<50xf32, #tpu.memory_space<smem>>
    %310 = arith.subf %308, %309 : f32
    %311 = vector.broadcast %310 : f32 to vector<1x64xf32>
    %312 = arith.mulf %43, %311 : vector<1x64xf32>
    %313 = vector.broadcast %309 : f32 to vector<1x64xf32>
    %314 = arith.addf %313, %312 : vector<1x64xf32>
    %315 = vector.broadcast %314 : vector<1x64xf32> to vector<16x64xf32>
    %316 = arith.mulf %85, %315 : vector<16x64xf32>
    %317 = arith.addf %307, %316 : vector<16x64xf32>
    %c23 = arith.constant 23 : index
    %318 = memref.load %arg2[%c23] : memref<50xf32, #tpu.memory_space<smem>>
    %c48 = arith.constant 48 : index
    %319 = memref.load %arg2[%c48] : memref<50xf32, #tpu.memory_space<smem>>
    %320 = arith.subf %318, %319 : f32
    %321 = vector.broadcast %320 : f32 to vector<1x64xf32>
    %322 = arith.mulf %43, %321 : vector<1x64xf32>
    %323 = vector.broadcast %319 : f32 to vector<1x64xf32>
    %324 = arith.addf %323, %322 : vector<1x64xf32>
    %325 = vector.broadcast %324 : vector<1x64xf32> to vector<16x64xf32>
    %326 = arith.mulf %99, %325 : vector<16x64xf32>
    %327 = arith.addf %317, %326 : vector<16x64xf32>
    %c1_i32_51 = arith.constant 1 : i32
    %328 = vector.broadcast %c1_i32_51 : i32 to vector<1x64xi32>
    %329 = arith.addi %39, %328 : vector<1x64xi32>
    %c0_i32_52 = arith.constant 0 : i32
    %330 = vector.broadcast %c0_i32_52 : i32 to vector<1x64xi32>
    %331 = arith.cmpi sge, %329, %330 : vector<1x64xi32>
    %c1_i32_53 = arith.constant 1 : i32
    %332 = vector.broadcast %c1_i32_53 : i32 to vector<1x64xi32>
    %333 = arith.addi %39, %332 : vector<1x64xi32>
    %c16_i32_54 = arith.constant 16 : i32
    %334 = vector.broadcast %c16_i32_54 : i32 to vector<1x64xi32>
    %335 = arith.cmpi slt, %333, %334 : vector<1x64xi32>
    %336 = arith.andi %331, %335 : vector<1x64xi1>
    %337 = arith.extui %336 : vector<1x64xi1> to vector<1x64xi32>
    %338 = arith.sitofp %337 : vector<1x64xi32> to vector<1x64xf32>
    %c63_i32 = arith.constant 63 : i32
    %339 = tpu.dynamic_rotate %327 by %c63_i32 dim 1 : vector<16x64xf32>, i32 -> vector<16x64xf32>
    %340 = vector.broadcast %338 : vector<1x64xf32> to vector<16x64xf32>
    %341 = arith.mulf %339, %340 : vector<16x64xf32>
    %342 = arith.addf %278, %341 : vector<16x64xf32>
    %c4 = arith.constant 4 : index
    %343 = memref.load %arg2[%c4] : memref<50xf32, #tpu.memory_space<smem>>
    %c29 = arith.constant 29 : index
    %344 = memref.load %arg2[%c29] : memref<50xf32, #tpu.memory_space<smem>>
    %345 = arith.subf %343, %344 : f32
    %346 = vector.broadcast %345 : f32 to vector<1x64xf32>
    %347 = arith.mulf %43, %346 : vector<1x64xf32>
    %348 = vector.broadcast %344 : f32 to vector<1x64xf32>
    %349 = arith.addf %348, %347 : vector<1x64xf32>
    %350 = vector.broadcast %349 : vector<1x64xf32> to vector<16x64xf32>
    %351 = arith.mulf %57, %350 : vector<16x64xf32>
    %c9 = arith.constant 9 : index
    %352 = memref.load %arg2[%c9] : memref<50xf32, #tpu.memory_space<smem>>
    %c34 = arith.constant 34 : index
    %353 = memref.load %arg2[%c34] : memref<50xf32, #tpu.memory_space<smem>>
    %354 = arith.subf %352, %353 : f32
    %355 = vector.broadcast %354 : f32 to vector<1x64xf32>
    %356 = arith.mulf %43, %355 : vector<1x64xf32>
    %357 = vector.broadcast %353 : f32 to vector<1x64xf32>
    %358 = arith.addf %357, %356 : vector<1x64xf32>
    %359 = vector.broadcast %358 : vector<1x64xf32> to vector<16x64xf32>
    %360 = arith.mulf %71, %359 : vector<16x64xf32>
    %361 = arith.addf %351, %360 : vector<16x64xf32>
    %c14 = arith.constant 14 : index
    %362 = memref.load %arg2[%c14] : memref<50xf32, #tpu.memory_space<smem>>
    %c39 = arith.constant 39 : index
    %363 = memref.load %arg2[%c39] : memref<50xf32, #tpu.memory_space<smem>>
    %364 = arith.subf %362, %363 : f32
    %365 = vector.broadcast %364 : f32 to vector<1x64xf32>
    %366 = arith.mulf %43, %365 : vector<1x64xf32>
    %367 = vector.broadcast %363 : f32 to vector<1x64xf32>
    %368 = arith.addf %367, %366 : vector<1x64xf32>
    %369 = vector.broadcast %368 : vector<1x64xf32> to vector<16x64xf32>
    %370 = arith.mulf %21, %369 : vector<16x64xf32>
    %371 = arith.addf %361, %370 : vector<16x64xf32>
    %c19 = arith.constant 19 : index
    %372 = memref.load %arg2[%c19] : memref<50xf32, #tpu.memory_space<smem>>
    %c44 = arith.constant 44 : index
    %373 = memref.load %arg2[%c44] : memref<50xf32, #tpu.memory_space<smem>>
    %374 = arith.subf %372, %373 : f32
    %375 = vector.broadcast %374 : f32 to vector<1x64xf32>
    %376 = arith.mulf %43, %375 : vector<1x64xf32>
    %377 = vector.broadcast %373 : f32 to vector<1x64xf32>
    %378 = arith.addf %377, %376 : vector<1x64xf32>
    %379 = vector.broadcast %378 : vector<1x64xf32> to vector<16x64xf32>
    %380 = arith.mulf %85, %379 : vector<16x64xf32>
    %381 = arith.addf %371, %380 : vector<16x64xf32>
    %c24 = arith.constant 24 : index
    %382 = memref.load %arg2[%c24] : memref<50xf32, #tpu.memory_space<smem>>
    %c49 = arith.constant 49 : index
    %383 = memref.load %arg2[%c49] : memref<50xf32, #tpu.memory_space<smem>>
    %384 = arith.subf %382, %383 : f32
    %385 = vector.broadcast %384 : f32 to vector<1x64xf32>
    %386 = arith.mulf %43, %385 : vector<1x64xf32>
    %387 = vector.broadcast %383 : f32 to vector<1x64xf32>
    %388 = arith.addf %387, %386 : vector<1x64xf32>
    %389 = vector.broadcast %388 : vector<1x64xf32> to vector<16x64xf32>
    %390 = arith.mulf %99, %389 : vector<16x64xf32>
    %391 = arith.addf %381, %390 : vector<16x64xf32>
    %c2_i32_55 = arith.constant 2 : i32
    %392 = vector.broadcast %c2_i32_55 : i32 to vector<1x64xi32>
    %393 = arith.addi %39, %392 : vector<1x64xi32>
    %c0_i32_56 = arith.constant 0 : i32
    %394 = vector.broadcast %c0_i32_56 : i32 to vector<1x64xi32>
    %395 = arith.cmpi sge, %393, %394 : vector<1x64xi32>
    %c2_i32_57 = arith.constant 2 : i32
    %396 = vector.broadcast %c2_i32_57 : i32 to vector<1x64xi32>
    %397 = arith.addi %39, %396 : vector<1x64xi32>
    %c16_i32_58 = arith.constant 16 : i32
    %398 = vector.broadcast %c16_i32_58 : i32 to vector<1x64xi32>
    %399 = arith.cmpi slt, %397, %398 : vector<1x64xi32>
    %400 = arith.andi %395, %399 : vector<1x64xi1>
    %401 = arith.extui %400 : vector<1x64xi1> to vector<1x64xi32>
    %402 = arith.sitofp %401 : vector<1x64xi32> to vector<1x64xf32>
    %c62_i32 = arith.constant 62 : i32
    %403 = tpu.dynamic_rotate %391 by %c62_i32 dim 1 : vector<16x64xf32>, i32 -> vector<16x64xf32>
    %404 = vector.broadcast %402 : vector<1x64xf32> to vector<16x64xf32>
    %405 = arith.mulf %403, %404 : vector<16x64xf32>
    %406 = arith.addf %342, %405 : vector<16x64xf32>
    %c0_59 = arith.constant 0 : index
    %c0_60 = arith.constant 0 : index
    %407 = vector.load %arg4[%c0_59, %c0_60] : memref<16x64xf32, #tpu.memory_space<vmem>>, vector<16x64xf32>
    tpu.vector_store %arg4[%c0_59, %c0_60], %406 {strides = array<i32>} : memref<16x64xf32, #tpu.memory_space<vmem>>, vector<16x64xf32>,
    %c0_61 = arith.constant 0 : index
    %c0_62 = arith.constant 0 : index
    %408 = vector.load %arg4[%c0_61, %c0_62] : memref<16x64xf32, #tpu.memory_space<vmem>>, vector<16x32xf32>
    %c0_63 = arith.constant 0 : index
    %c32_64 = arith.constant 32 : index
    %409 = vector.load %arg4[%c0_63, %c32_64] : memref<16x64xf32, #tpu.memory_space<vmem>>, vector<16x32xf32>
    %410 = arith.addf %408, %409 : vector<16x32xf32>
    %cst_65 = arith.constant 2.000000e+00 : f32
    %411 = vector.broadcast %cst_65 : f32 to vector<16x32xf32>
    %412 = arith.addf %410, %411 : vector<16x32xf32>
    %413 = arith.negf %412 : vector<16x32xf32>
    %414 = math.exp %413 : vector<16x32xf32>
    %cst_66 = arith.constant 1.000000e+00 : f32
    %415 = vector.broadcast %cst_66 : f32 to vector<16x32xf32>
    %416 = arith.addf %415, %414 : vector<16x32xf32>
    %417 = arith.divf %415, %416 : vector<16x32xf32>
    %cst_67 = arith.constant 9.99999974E-5 : f32
    %418 = vector.broadcast %cst_67 : f32 to vector<16x32xf32>
    %419 = arith.addf %417, %418 : vector<16x32xf32>
    %c0_68 = arith.constant 0 : index
    %c0_69 = arith.constant 0 : index
    %c0_70 = arith.constant 0 : index
    %420 = vector.load %arg3[%c0_68, %c0_69, %c0_70] : memref<1x16x32xf32, #tpu.memory_space<vmem>>, vector<1x16x32xf32>
    %421 = vector.shape_cast %420 : vector<1x16x32xf32> to vector<16x32xf32>
    %422 = vector.shape_cast %419 : vector<16x32xf32> to vector<1x16x32xf32>
    tpu.vector_store %arg3[%c0_68, %c0_69, %c0_70], %422 {strides = array<i32>} : memref<1x16x32xf32, #tpu.memory_space<vmem>>, vector<1x16x32xf32>,
    return
  }
  func.func @transform_0(%arg0: i32) -> (i32, i32, i32, i32) {
    %c0_i32 = arith.constant 0 : i32
    %c0_i32_0 = arith.constant 0 : i32
    %c0_i32_1 = arith.constant 0 : i32
    %c0_i32_2 = arith.constant 0 : i32
    return %arg0, %c0_i32, %c0_i32_0, %c0_i32_1 : i32, i32, i32, i32
  }
  func.func @transform_1(%arg0: i32) -> i32 {
    %c0_i32 = arith.constant 0 : i32
    %c0_i32_0 = arith.constant 0 : i32
    return %c0_i32 : i32
  }
  func.func @transform_2(%arg0: i32) -> (i32, i32, i32) {
    %c0_i32 = arith.constant 0 : i32
    %c0_i32_0 = arith.constant 0 : i32
    %c0_i32_1 = arith.constant 0 : i32
    return %arg0, %c0_i32, %c0_i32_0 : i32, i32, i32
  }
}

</mosaic_0001>

<llo_original>
// kernel: spatialmap_forward.1
$region0: #{spatialmap_forward.1}
  #allocation0 [shape = 'u32[]', space=smem, size = 0x4, offset = 0x4, fixed_abs, tag = 'smem constant byte address 0x4 - core index']
  #allocation1 [shape = 'u32[72,128]{1,0:T(1,128)}', space=vmem, size = 0x9000, scoped, tag = 'internal scratch']
  #allocation2 [shape = 'f32[16,64]{1,0:T(8,128)}', space=vmem, size = 0x2000, scoped, tag = 'scratch operand']
  %s0 = inlined_call_operand.vmem [shape: f32[1,4,16,32], index: 0, kind: input, shape index: {}]
  %s1 = inlined_call_operand.vmem [shape: f32[50], index: 1, kind: input, shape index: {}]
  %s2 = inlined_call_operand.vmem [shape: f32[1,16,32], index: 2, kind: output, shape index: {}]
  %s3 = sld [smem:[#allocation0]]
  $region22: #{spatialmap_forward.1} parent=0
    _
  %s5 = ssub.s32 1, %s3
  %s6 = scalar_select 0, %s5, %s3
  $region1: #{spatialmap_forward.1} parent=0
    #allocation3 [shape = 'u8[512]{0}', space=smem, size = 0x200, scoped, tag = 'input window, operand 1, single buffered']
    #allocation4 [shape = 's32[1]{0}', space=sflag, size = 0x4, scoped, tag = 'scoped memory for spatialmap_forward.1']
    %7 = vsyncpa [#allocation4], 0
    // Predicated region
    $region2: #{spatialmap_forward.1} parent=1 // pred_check
      _
    $region3: #{spatialmap_forward.1} parent=1 // pred_check_branch
      %9 = sbr.rel (0) target = $region5
    $region4: #{spatialmap_forward.1} parent=1 // pred_region
      _
    $region5: #{spatialmap_forward.1} parent=1 // pred_fallthru
      _
    // Predicated region
    $region6: #{spatialmap_forward.1} parent=1 // pred_check
      _
    $region7: #{spatialmap_forward.1} parent=1 // pred_check_branch
      %11 = sbr.rel (0) target = $region9
    $region8: #{spatialmap_forward.1} parent=1 // pred_region
      %13 = vsyncadd [#allocation4], 0
      %s15 = sshll.u32 %s1, 4
      %s16 = int_to_ptr.vmem [resolvable:$true] %s15
      %18 = dma.vmem_to_smem %s16, 16, [#allocation3], [#allocation4]
    $region9: #{spatialmap_forward.1} parent=1 // pred_fallthru
      _
    // Predicated region
    $region10: #{spatialmap_forward.1} parent=1 // pred_check
      _
    $region11: #{spatialmap_forward.1} parent=1 // pred_check_branch
      %20 = sbr.rel (0) target = $region13
    $region12: #{spatialmap_forward.1} parent=1 // pred_region
      %22 = dma.done [#allocation4], 16
    $region13: #{spatialmap_forward.1} parent=1 // pred_fallthru
      _
    %23 = sfence
    %v24 = vld [vmem:[%s0] sm:$0xff]
    %v25 = vld [vmem:[%s0 + $0x8] sm:$0xff]
    %s26 = scalar_lea.vmem %s0, 16
    %v27 = vld [vmem:[%s26] sm:$0xff]
    %v28 = vld [vmem:[%s26 + $0x8] sm:$0xff]
    %v29 = vmax.f32 %v24, %v27
    %v30 = vmax.f32 %v25, %v28
    %v31 = vadd.f32 %v24, %v27
    %v32 = vadd.f32 %v25, %v28
    %s33 = scalar_lea.vmem %s0, 32
    %v34 = vld [vmem:[%s33] sm:$0xff]
    %v35 = vld [vmem:[%s33 + $0x8] sm:$0xff]
    %v36 = vmax.f32 %v29, %v34
    %v37 = vmax.f32 %v30, %v35
    %v38 = vadd.f32 %v31, %v34
    %v39 = vadd.f32 %v32, %v35
    %s40 = scalar_lea.vmem %s0, 48
    %v41 = vld [vmem:[%s40] sm:$0xff]
    %v42 = vld [vmem:[%s40 + $0x8] sm:$0xff]
    %v43 = vmax.f32 %v36, %v41
    %v44 = vmax.f32 %v37, %v42
    %v45 = vadd.f32 %v38, %v41
    %v46 = vadd.f32 %v39, %v42
    %vm47 = vcmask 261120
    %48 = vst.msk [vmem:[#allocation2] sm:$0xff] %vm47, %v43
    %49 = vst.msk [vmem:[#allocation2 + $0x8] sm:$0xff] %vm47, %v44
    %v50 = vmul.f32 %v45, 0.25
    %v51 = vmul.f32 %v46, 0.25
    %54 = vrot.lane.b32.xlu0 %v50, 32
    %v55 = vpop.permute.xlu0 %54
    %56 = vrot.lane.b32.xlu0 %v51, 32
    %v57 = vpop.permute.xlu0 %56
    %vm60 = vcmask 523520
    %61 = vst.msk [vmem:[#allocation2] sm:$0xff] %vm60, %v55
    %62 = vst.msk [vmem:[#allocation2 + $0x8] sm:$0xff] %vm60, %v57
    %v63 = vld [vmem:[#allocation2] sm:$0xff]
    %v64 = vld [vmem:[#allocation2 + $0x8] sm:$0xff]
    %v65 = vlaneseq
    %v66 = vshrl.u32 %v65, 7
    %v67 = vadd.s32 %v66, 8
    %v68 = vlaneseq
    %v69 = vand.u32 %v68, 127
    %vm70 = vcmp.lt.s32.totalorder %v69, 0
    %v71 = vsub.s32 0, %v69
    %v72 = vsel %vm70, %v71, %v69
    %v73 = vshrl.u32 %v72, 4
    %v74 = vand.u32 %v72, 15
    %v75 = vsub.s32 0, %v74
    %v76 = vsel %vm70, %v75, %v74
    %vm77 = vcmp.ne.s32.totalorder %v76, 0
    %vm78 = vcmp.lt.s32.totalorder %v76, 0
    %vm79 = vmand %vm78, %vm77
    %v80 = vadd.s32 %v76, 16
    %v81 = vsel %vm79, %v80, %v76
    %vm82 = vcmp.lt.s32.totalorder %v69, 32
    %v83 = vsel %vm82, 1, 0
    %v84 = vcvt.s32.f32 %v83
    %v85 = vadd.s32 %v66, 4294967294
    %v86 = vadd.s32 %v67, 4294967294
    %vm87 = vcmp.ge.s32.totalorder %v85, 0
    %vm88 = vcmp.ge.s32.totalorder %v86, 0
    %vm89 = vcmp.lt.s32.totalorder %v85, 16
    %vm90 = vcmp.lt.s32.totalorder %v86, 16
    %vm91 = vmand %vm87, %vm89
    %vm92 = vmand %vm88, %vm90
    %v93 = vsel %vm91, 1, 0
    %v94 = vsel %vm92, 1, 0
    %v95 = vcvt.s32.f32 %v93
    %v96 = vcvt.s32.f32 %v94
    %v97 = vrot.slane %v63, 6
    %v98 = vrot.slane %v64, 6
    %vm99 = vcmp.lt.s32.totalorder %v66, 2
    %v100 = vsel %vm99, %v97, %v98
    %v101 = vsel %vm99, %v98, %v97
    %v102 = vmul.f32 %v101, %v95
    %v103 = vmul.f32 %v100, %v96
    %v104 = vadd.s32 %v66, 4294967295
    %v105 = vadd.s32 %v67, 4294967295
    %vm106 = vcmp.ge.s32.totalorder %v104, 0
    %vm107 = vcmp.ge.s32.totalorder %v105, 0
    %vm108 = vcmp.lt.s32.totalorder %v104, 16
    %vm109 = vcmp.lt.s32.totalorder %v105, 16
    %vm110 = vmand %vm106, %vm108
    %vm111 = vmand %vm107, %vm109
    %v112 = vsel %vm110, 1, 0
    %v113 = vsel %vm111, 1, 0
    %v114 = vcvt.s32.f32 %v112
    %v115 = vcvt.s32.f32 %v113
    %v116 = vrot.slane %v63, 7
    %v117 = vrot.slane %v64, 7
    %vm118 = vcmp.lt.s32.totalorder %v66, 1
    %v119 = vsel %vm118, %v116, %v117
    %v120 = vsel %vm118, %v117, %v116
    %v121 = vmul.f32 %v120, %v114
    %v122 = vmul.f32 %v119, %v115
    %v123 = vadd.s32 %v66, 1
    %v124 = vadd.s32 %v67, 1
    %vm125 = vcmp.ge.s32.totalorder %v123, 0
    %vm126 = vcmp.ge.s32.totalorder %v124, 0
    %vm127 = vcmp.lt.s32.totalorder %v123, 16
    %vm128 = vcmp.lt.s32.totalorder %v124, 16
    %vm129 = vmand %vm125, %vm127
    %vm130 = vmand %vm126, %vm128
    %v131 = vsel %vm129, 1, 0
    %v132 = vsel %vm130, 1, 0
    %v133 = vcvt.s32.f32 %v131
    %v134 = vcvt.s32.f32 %v132
    %v135 = vrot.slane %v63, 1
    %v136 = vrot.slane %v64, 1
    %vm137 = vcmp.lt.s32.totalorder %v66, 7
    %v138 = vsel %vm137, %v135, %v136
    %v139 = vsel %vm137, %v136, %v135
    %v140 = vmul.f32 %v138, %v133
    %v141 = vmul.f32 %v139, %v134
    %v142 = vadd.s32 %v66, 2
    %v143 = vadd.s32 %v67, 2
    %vm144 = vcmp.ge.s32.totalorder %v142, 0
    %vm145 = vcmp.ge.s32.totalorder %v143, 0
    %vm146 = vcmp.lt.s32.totalorder %v142, 16
    %vm147 = vcmp.lt.s32.totalorder %v143, 16
    %vm148 = vmand %vm144, %vm146
    %vm149 = vmand %vm145, %vm147
    %v150 = vsel %vm148, 1, 0
    %v151 = vsel %vm149, 1, 0
    %v152 = vcvt.s32.f32 %v150
    %v153 = vcvt.s32.f32 %v151
    %v154 = vrot.slane %v63, 2
    %v155 = vrot.slane %v64, 2
    %vm156 = vcmp.lt.s32.totalorder %v66, 6
    %v157 = vsel %vm156, %v154, %v155
    %v158 = vsel %vm156, %v155, %v154
    %v159 = vmul.f32 %v157, %v152
    %v160 = vmul.f32 %v158, %v153
    %s161 = sld [smem:[#allocation3]]
    %s162 = sld [smem:[#allocation3 + $0x19]]
    %s163 = ssub.f32 %s161, %s162
    %v164 = vstv %s163
    %v165 = vmul.f32 %v84, %v164
    %v166 = vstv %s162
    %v167 = vadd.f32 %v166, %v165
    %v168 = vmul.f32 %v102, %v167
    %v169 = vmul.f32 %v103, %v167
    %s170 = sld [smem:[#allocation3 + $0x5]]
    %s171 = sld [smem:[#allocation3 + $0x1e]]
    %s172 = ssub.f32 %s170, %s171
    %v173 = vstv %s172
    %v174 = vmul.f32 %v84, %v173
    %v175 = vstv %s171
    %v176 = vadd.f32 %v175, %v174
    %v177 = vmul.f32 %v121, %v176
    %v178 = vmul.f32 %v122, %v176
    %v179 = vadd.f32 %v168, %v177
    %v180 = vadd.f32 %v169, %v178
    %s181 = sld [smem:[#allocation3 + $0xa]]
    %s182 = sld [smem:[#allocation3 + $0x23]]
    %s183 = ssub.f32 %s181, %s182
    %v184 = vstv %s183
    %v185 = vmul.f32 %v84, %v184
    %v186 = vstv %s182
    %v187 = vadd.f32 %v186, %v185
    %v188 = vmul.f32 %v63, %v187
    %v189 = vmul.f32 %v64, %v187
    %v190 = vadd.f32 %v179, %v188
    %v191 = vadd.f32 %v180, %v189
    %s192 = sld [smem:[#allocation3 + $0xf]]
    %s193 = sld [smem:[#allocation3 + $0x28]]
    %s194 = ssub.f32 %s192, %s193
    %v195 = vstv %s194
    %v196 = vmul.f32 %v84, %v195
    %v197 = vstv %s193
    %v198 = vadd.f32 %v197, %v196
    %v199 = vmul.f32 %v140, %v198
    %v200 = vmul.f32 %v141, %v198
    %v201 = vadd.f32 %v190, %v199
    %v202 = vadd.f32 %v191, %v200
    %s203 = sld [smem:[#allocation3 + $0x14]]
    %s204 = sld [smem:[#allocation3 + $0x2d]]
    %s205 = ssub.f32 %s203, %s204
    %v206 = vstv %s205
    %v207 = vmul.f32 %v84, %v206
    %v208 = vstv %s204
    %v209 = vadd.f32 %v208, %v207
    %v210 = vmul.f32 %v159, %v209
    %v211 = vmul.f32 %v160, %v209
    %v212 = vadd.f32 %v201, %v210
    %v213 = vadd.f32 %v202, %v211
    %v214 = vadd.s32 %v81, 4294967294
    %vm215 = vcmp.ge.s32.totalorder %v214, 0
    %vm216 = vcmp.lt.s32.totalorder %v214, 16
    %vm217 = vmand %vm215, %vm216
    %v218 = vsel %vm217, 1, 0
    %v219 = vcvt.s32.f32 %v218
    %vm220 = vcmask 1048064
    %221 = vrot.lane.b32.xlu0 %v212, 64
    %v222 = vpop.permute.xlu0 %221
    %v223 = vsel %vm220, %v222, %v212
    %224 = vrot.lane.b32.xlu0 %v213, 64
    %v225 = vpop.permute.xlu0 %224
    %v226 = vsel %vm220, %v225, %v213
    %227 = vrot.lane.b32.xlu0 %v223, 64
    %v228 = vpop.permute.xlu0 %227
    %229 = vrot.lane.b32.xlu0 %v226, 64
    %v230 = vpop.permute.xlu0 %229
    %v231 = vsel %vm220, %v228, %v212
    %v232 = vsel %vm220, %v230, %v213
    %234 = vrot.lane.b32.xlu0 %v219, 62
    %v235 = vpop.permute.xlu0 %234
    %v237 = vmul.f32 %v231, %v235
    %v238 = vmul.f32 %v232, %v235
    %v239 = vadd.f32 %v237, 0.0
    %v240 = vadd.f32 %v238, 0.0
    %s241 = sld [smem:[#allocation3 + $0x1]]
    %s242 = sld [smem:[#allocation3 + $0x1a]]
    %s243 = ssub.f32 %s241, %s242
    %v244 = vstv %s243
    %v245 = vmul.f32 %v84, %v244
    %v246 = vstv %s242
    %v247 = vadd.f32 %v246, %v245
    %v248 = vmul.f32 %v102, %v247
    %v249 = vmul.f32 %v103, %v247
    %s250 = sld [smem:[#allocation3 + $0x6]]
    %s251 = sld [smem:[#allocation3 + $0x1f]]
    %s252 = ssub.f32 %s250, %s251
    %v253 = vstv %s252
    %v254 = vmul.f32 %v84, %v253
    %v255 = vstv %s251
    %v256 = vadd.f32 %v255, %v254
    %v257 = vmul.f32 %v121, %v256
    %v258 = vmul.f32 %v122, %v256
    %v259 = vadd.f32 %v248, %v257
    %v260 = vadd.f32 %v249, %v258
    %s261 = sld [smem:[#allocation3 + $0xb]]
    %s262 = sld [smem:[#allocation3 + $0x24]]
    %s263 = ssub.f32 %s261, %s262
    %v264 = vstv %s263
    %v265 = vmul.f32 %v84, %v264
    %v266 = vstv %s262
    %v267 = vadd.f32 %v266, %v265
    %v268 = vmul.f32 %v63, %v267
    %v269 = vmul.f32 %v64, %v267
    %v270 = vadd.f32 %v259, %v268
    %v271 = vadd.f32 %v260, %v269
    %s272 = sld [smem:[#allocation3 + $0x10]]
    %s273 = sld [smem:[#allocation3 + $0x29]]
    %s274 = ssub.f32 %s272, %s273
    %v275 = vstv %s274
    %v276 = vmul.f32 %v84, %v275
    %v277 = vstv %s273
    %v278 = vadd.f32 %v277, %v276
    %v279 = vmul.f32 %v140, %v278
    %v280 = vmul.f32 %v141, %v278
    %v281 = vadd.f32 %v270, %v279
    %v282 = vadd.f32 %v271, %v280
    %s283 = sld [smem:[#allocation3 + $0x15]]
    %s284 = sld [smem:[#allocation3 + $0x2e]]
    %s285 = ssub.f32 %s283, %s284
    %v286 = vstv %s285
    %v287 = vmul.f32 %v84, %v286
    %v288 = vstv %s284
    %v289 = vadd.f32 %v288, %v287
    %v290 = vmul.f32 %v159, %v289
    %v291 = vmul.f32 %v160, %v289
    %v292 = vadd.f32 %v281, %v290
    %v293 = vadd.f32 %v282, %v291
    %v294 = vadd.s32 %v81, 4294967295
    %vm295 = vcmp.ge.s32.totalorder %v294, 0
    %vm296 = vcmp.lt.s32.totalorder %v294, 16
    %vm297 = vmand %vm295, %vm296
    %v298 = vsel %vm297, 1, 0
    %v299 = vcvt.s32.f32 %v298
    %300 = vrot.lane.b32.xlu0 %v292, 64
    %v301 = vpop.permute.xlu0 %300
    %v302 = vsel %vm220, %v301, %v292
    %303 = vrot.lane.b32.xlu0 %v293, 64
    %v304 = vpop.permute.xlu0 %303
    %v305 = vsel %vm220, %v304, %v293
    %306 = vrot.lane.b32.xlu0 %v302, 64
    %v307 = vpop.permute.xlu0 %306
    %308 = vrot.lane.b32.xlu0 %v305, 64
    %v309 = vpop.permute.xlu0 %308
    %v310 = vsel %vm220, %v307, %v292
    %v311 = vsel %vm220, %v309, %v293
    %313 = vrot.lane.b32.xlu0 %v299, 63
    %v314 = vpop.permute.xlu0 %313
    %v316 = vmul.f32 %v310, %v314
    %v317 = vmul.f32 %v311, %v314
    %320 = vrot.lane.b32.xlu0 %v316, 127
    %v321 = vpop.permute.xlu0 %320
    %322 = vrot.lane.b32.xlu0 %v317, 127
    %v323 = vpop.permute.xlu0 %322
    %v326 = vadd.f32 %v239, %v321
    %v327 = vadd.f32 %v240, %v323
    %s328 = sld [smem:[#allocation3 + $0x2]]
    %s329 = sld [smem:[#allocation3 + $0x1b]]
    %s330 = ssub.f32 %s328, %s329
    %v331 = vstv %s330
    %v332 = vmul.f32 %v84, %v331
    %v333 = vstv %s329
    %v334 = vadd.f32 %v333, %v332
    %v335 = vmul.f32 %v102, %v334
    %v336 = vmul.f32 %v103, %v334
    %s337 = sld [smem:[#allocation3 + $0x7]]
    %s338 = sld [smem:[#allocation3 + $0x20]]
    %s339 = ssub.f32 %s337, %s338
    %v340 = vstv %s339
    %v341 = vmul.f32 %v84, %v340
    %v342 = vstv %s338
    %v343 = vadd.f32 %v342, %v341
    %v344 = vmul.f32 %v121, %v343
    %v345 = vmul.f32 %v122, %v343
    %v346 = vadd.f32 %v335, %v344
    %v347 = vadd.f32 %v336, %v345
    %s348 = sld [smem:[#allocation3 + $0xc]]
    %s349 = sld [smem:[#allocation3 + $0x25]]
    %s350 = ssub.f32 %s348, %s349
    %v351 = vstv %s350
    %v352 = vmul.f32 %v84, %v351
    %v353 = vstv %s349
    %v354 = vadd.f32 %v353, %v352
    %v355 = vmul.f32 %v63, %v354
    %v356 = vmul.f32 %v64, %v354
    %v357 = vadd.f32 %v346, %v355
    %v358 = vadd.f32 %v347, %v356
    %s359 = sld [smem:[#allocation3 + $0x11]]
    %s360 = sld [smem:[#allocation3 + $0x2a]]
    %s361 = ssub.f32 %s359, %s360
    %v362 = vstv %s361
    %v363 = vmul.f32 %v84, %v362
    %v364 = vstv %s360
    %v365 = vadd.f32 %v364, %v363
    %v366 = vmul.f32 %v140, %v365
    %v367 = vmul.f32 %v141, %v365
    %v368 = vadd.f32 %v357, %v366
    %v369 = vadd.f32 %v358, %v367
    %s370 = sld [smem:[#allocation3 + $0x16]]
    %s371 = sld [smem:[#allocation3 + $0x2f]]
    %s372 = ssub.f32 %s370, %s371
    %v373 = vstv %s372
    %v374 = vmul.f32 %v84, %v373
    %v375 = vstv %s371
    %v376 = vadd.f32 %v375, %v374
    %v377 = vmul.f32 %v159, %v376
    %v378 = vmul.f32 %v160, %v376
    %v379 = vadd.f32 %v368, %v377
    %v380 = vadd.f32 %v369, %v378
    %383 = vrot.lane.b32.xlu0 %v379, 62
    %v384 = vpop.permute.xlu0 %383
    %385 = vrot.lane.b32.xlu0 %v380, 62
    %v386 = vpop.permute.xlu0 %385
    %v389 = vadd.f32 %v326, %v384
    %v390 = vadd.f32 %v327, %v386
    %s391 = sld [smem:[#allocation3 + $0x3]]
    %s392 = sld [smem:[#allocation3 + $0x1c]]
    %s393 = ssub.f32 %s391, %s392
    %v394 = vstv %s393
    %v395 = vmul.f32 %v84, %v394
    %v396 = vstv %s392
    %v397 = vadd.f32 %v396, %v395
    %v398 = vmul.f32 %v102, %v397
    %v399 = vmul.f32 %v103, %v397
    %s400 = sld [smem:[#allocation3 + $0x8]]
    %s401 = sld [smem:[#allocation3 + $0x21]]
    %s402 = ssub.f32 %s400, %s401
    %v403 = vstv %s402
    %v404 = vmul.f32 %v84, %v403
    %v405 = vstv %s401
    %v406 = vadd.f32 %v405, %v404
    %v407 = vmul.f32 %v121, %v406
    %v408 = vmul.f32 %v122, %v406
    %v409 = vadd.f32 %v398, %v407
    %v410 = vadd.f32 %v399, %v408
    %s411 = sld [smem:[#allocation3 + $0xd]]
    %s412 = sld [smem:[#allocation3 + $0x26]]
    %s413 = ssub.f32 %s411, %s412
    %v414 = vstv %s413
    %v415 = vmul.f32 %v84, %v414
    %v416 = vstv %s412
    %v417 = vadd.f32 %v416, %v415
    %v418 = vmul.f32 %v63, %v417
    %v419 = vmul.f32 %v64, %v417
    %v420 = vadd.f32 %v409, %v418
    %v421 = vadd.f32 %v410, %v419
    %s422 = sld [smem:[#allocation3 + $0x12]]
    %s423 = sld [smem:[#allocation3 + $0x2b]]
    %s424 = ssub.f32 %s422, %s423
    %v425 = vstv %s424
    %v426 = vmul.f32 %v84, %v425
    %v427 = vstv %s423
    %v428 = vadd.f32 %v427, %v426
    %v429 = vmul.f32 %v140, %v428
    %v430 = vmul.f32 %v141, %v428
    %v431 = vadd.f32 %v420, %v429
    %v432 = vadd.f32 %v421, %v430
    %s433 = sld [smem:[#allocation3 + $0x17]]
    %s434 = sld [smem:[#allocation3 + $0x30]]
    %s435 = ssub.f32 %s433, %s434
    %v436 = vstv %s435
    %v437 = vmul.f32 %v84, %v436
    %v438 = vstv %s434
    %v439 = vadd.f32 %v438, %v437
    %v440 = vmul.f32 %v159, %v439
    %v441 = vmul.f32 %v160, %v439
    %v442 = vadd.f32 %v431, %v440
    %v443 = vadd.f32 %v432, %v441
    %v444 = vadd.s32 %v81, 1
    %vm445 = vcmp.ge.s32.totalorder %v444, 0
    %vm446 = vcmp.lt.s32.totalorder %v444, 16
    %vm447 = vmand %vm445, %vm446
    %v448 = vsel %vm447, 1, 0
    %v449 = vcvt.s32.f32 %v448
    %450 = vrot.lane.b32.xlu0 %v442, 64
    %v451 = vpop.permute.xlu0 %450
    %v452 = vsel %vm220, %v451, %v442
    %453 = vrot.lane.b32.xlu0 %v443, 64
    %v454 = vpop.permute.xlu0 %453
    %v455 = vsel %vm220, %v454, %v443
    %456 = vrot.lane.b32.xlu0 %v452, 64
    %v457 = vpop.permute.xlu0 %456
    %458 = vrot.lane.b32.xlu0 %v455, 64
    %v459 = vpop.permute.xlu0 %458
    %v460 = vsel %vm220, %v457, %v442
    %v461 = vsel %vm220, %v459, %v443
    %463 = vrot.lane.b32.xlu0 %v449, 1
    %v464 = vpop.permute.xlu0 %463
    %v466 = vmul.f32 %v460, %v464
    %v467 = vmul.f32 %v461, %v464
    %470 = vrot.lane.b32.xlu0 %v466, 61
    %v471 = vpop.permute.xlu0 %470
    %472 = vrot.lane.b32.xlu0 %v467, 61
    %v473 = vpop.permute.xlu0 %472
    %v476 = vadd.f32 %v389, %v471
    %v477 = vadd.f32 %v390, %v473
    %s478 = sld [smem:[#allocation3 + $0x4]]
    %s479 = sld [smem:[#allocation3 + $0x1d]]
    %s480 = ssub.f32 %s478, %s479
    %v481 = vstv %s480
    %v482 = vmul.f32 %v84, %v481
    %v483 = vstv %s479
    %v484 = vadd.f32 %v483, %v482
    %v485 = vmul.f32 %v102, %v484
    %v486 = vmul.f32 %v103, %v484
    %s487 = sld [smem:[#allocation3 + $0x9]]
    %s488 = sld [smem:[#allocation3 + $0x22]]
    %s489 = ssub.f32 %s487, %s488
    %v490 = vstv %s489
    %v491 = vmul.f32 %v84, %v490
    %v492 = vstv %s488
    %v493 = vadd.f32 %v492, %v491
    %v494 = vmul.f32 %v121, %v493
    %v495 = vmul.f32 %v122, %v493
    %v496 = vadd.f32 %v485, %v494
    %v497 = vadd.f32 %v486, %v495
    %s498 = sld [smem:[#allocation3 + $0xe]]
    %s499 = sld [smem:[#allocation3 + $0x27]]
    %s500 = ssub.f32 %s498, %s499
    %v501 = vstv %s500
    %v502 = vmul.f32 %v84, %v501
    %v503 = vstv %s499
    %v504 = vadd.f32 %v503, %v502
    %v505 = vmul.f32 %v63, %v504
    %v506 = vmul.f32 %v64, %v504
    %v507 = vadd.f32 %v496, %v505
    %v508 = vadd.f32 %v497, %v506
    %s509 = sld [smem:[#allocation3 + $0x13]]
    %s510 = sld [smem:[#allocation3 + $0x2c]]
    %s511 = ssub.f32 %s509, %s510
    %v512 = vstv %s511
    %v513 = vmul.f32 %v84, %v512
    %v514 = vstv %s510
    %v515 = vadd.f32 %v514, %v513
    %v516 = vmul.f32 %v140, %v515
    %v517 = vmul.f32 %v141, %v515
    %v518 = vadd.f32 %v507, %v516
    %v519 = vadd.f32 %v508, %v517
    %s520 = sld [smem:[#allocation3 + $0x18]]
    %s521 = sld [smem:[#allocation3 + $0x31]]
    %s522 = ssub.f32 %s520, %s521
    %v523 = vstv %s522
    %v524 = vmul.f32 %v84, %v523
    %v525 = vstv %s521
    %v526 = vadd.f32 %v525, %v524
    %v527 = vmul.f32 %v159, %v526
    %v528 = vmul.f32 %v160, %v526
    %v529 = vadd.f32 %v518, %v527
    %v530 = vadd.f32 %v519, %v528
    %v531 = vadd.s32 %v81, 2
    %vm532 = vcmp.ge.s32.totalorder %v531, 0
    %vm533 = vcmp.lt.s32.totalorder %v531, 16
    %vm534 = vmand %vm532, %vm533
    %v535 = vsel %vm534, 1, 0
    %v536 = vcvt.s32.f32 %v535
    %537 = vrot.lane.b32.xlu0 %v529, 64
    %v538 = vpop.permute.xlu0 %537
    %v539 = vsel %vm220, %v538, %v529
    %540 = vrot.lane.b32.xlu0 %v530, 64
    %v541 = vpop.permute.xlu0 %540
    %v542 = vsel %vm220, %v541, %v530
    %543 = vrot.lane.b32.xlu0 %v539, 64
    %v544 = vpop.permute.xlu0 %543
    %545 = vrot.lane.b32.xlu0 %v542, 64
    %v546 = vpop.permute.xlu0 %545
    %v547 = vsel %vm220, %v544, %v529
    %v548 = vsel %vm220, %v546, %v530
    %550 = vrot.lane.b32.xlu0 %v536, 2
    %v551 = vpop.permute.xlu0 %550
    %v553 = vmul.f32 %v547, %v551
    %v554 = vmul.f32 %v548, %v551
    %557 = vrot.lane.b32.xlu0 %v553, 60
    %v558 = vpop.permute.xlu0 %557
    %559 = vrot.lane.b32.xlu0 %v554, 60
    %v560 = vpop.permute.xlu0 %559
    %v563 = vadd.f32 %v476, %v558
    %v564 = vadd.f32 %v477, %v560
    %567 = vrot.lane.b32.xlu0 %v563, 66
    %v568 = vpop.permute.xlu0 %567
    %569 = vrot.lane.b32.xlu0 %v564, 66
    %v570 = vpop.permute.xlu0 %569
    %vm573 = vcmask 523264
    %574 = vst.msk [vmem:[#allocation2] sm:$0xff] %vm573, %v568
    %575 = vst.msk [vmem:[#allocation2 + $0x8] sm:$0xff] %vm573, %v570
    %v576 = vld [vmem:[#allocation2] sm:$0xff]
    %v577 = vld [vmem:[#allocation2 + $0x8] sm:$0xff]
    %580 = vrot.lane.b32.xlu0 %v576, 96
    %v581 = vpop.permute.xlu0 %580
    %582 = vrot.lane.b32.xlu0 %v577, 96
    %v583 = vpop.permute.xlu0 %582
    %v586 = vadd.f32 %v576, %v581
    %v587 = vadd.f32 %v577, %v583
    %v588 = vadd.f32 %v586, 2.0
    %v589 = vadd.f32 %v587, 2.0
    %v590 = vxor.u32 %v588, 2147483648
    %v591 = vxor.u32 %v589, 2147483648
    %v592 = vmul.f32 %v590, 1.442695
    %v593 = vpow.pop %v592
    %v594 = vmul.f32 %v591, 1.442695
    %v595 = vpow.pop %v594
    %v596 = vadd.f32 %v593, 1.0
    %v597 = vadd.f32 %v595, 1.0
    %v598 = vrcp.pop %v596
    %v599 = vmul.f32 %v596, %v598
    %v600 = vsub.f32 1.0, %v599
    %v601 = vmul.f32 %v598, %v600
    %v602 = vadd.f32 %v598, %v601
    %vm603 = vweird.f32 %v596
    %vm604 = vweird.f32 %v598
    %vm605 = vmor %vm603, %vm604
    %v606 = vsel %vm605, %v598, %v602
    %v607 = vand.u32 2147483647, %v596
    %vm608 = vcmp.eq.f32.partialorder %v607, 8.507059e+37
    %v609 = vand.u32 %v596, 2147483648
    %v610 = vor.u32 1.1754944e-38, %v609
    %v611 = vsel %vm608, %v610, %v606
    %v612 = vmul.f32 1.0, %v611
    %v613 = vrcp.pop %v597
    %v614 = vmul.f32 %v597, %v613
    %v615 = vsub.f32 1.0, %v614
    %v616 = vmul.f32 %v613, %v615
    %v617 = vadd.f32 %v613, %v616
    %vm618 = vweird.f32 %v597
    %vm619 = vweird.f32 %v613
    %vm620 = vmor %vm618, %vm619
    %v621 = vsel %vm620, %v613, %v617
    %v622 = vand.u32 2147483647, %v597
    %vm623 = vcmp.eq.f32.partialorder %v622, 8.507059e+37
    %v624 = vand.u32 %v597, 2147483648
    %v625 = vor.u32 1.1754944e-38, %v624
    %v626 = vsel %vm623, %v625, %v621
    %v627 = vmul.f32 1.0, %v626
    %v628 = vadd.f32 %v612, 0.0001
    %v629 = vadd.f32 %v627, 0.0001
    %630 = vst.msk [vmem:[%s2] sm:$0xff] %vm47, %v628
    %631 = vst.msk [vmem:[%s2 + $0x8] sm:$0xff] %vm47, %v629
    // Predicated region
    $region14: #{spatialmap_forward.1} parent=1 // pred_check
      _
    $region15: #{spatialmap_forward.1} parent=1 // pred_check_branch
      %633 = sbr.rel (0) target = $region17
    $region16: #{spatialmap_forward.1} parent=1 // pred_region
      _
    $region17: #{spatialmap_forward.1} parent=1 // pred_fallthru
      _
    // Predicated region
    $region18: #{spatialmap_forward.1} parent=1 // pred_check
      _
    $region19: #{spatialmap_forward.1} parent=1 // pred_check_branch
      %635 = sbr.rel (0) target = $region21
    $region20: #{spatialmap_forward.1} parent=1 // pred_region
      _
    $region21: #{spatialmap_forward.1} parent=1 // pred_fallthru
      _
    %636 = vsyncpa [#allocation4], 1

</llo_original>
